<compile_context>
chip_gen: v6e
topology: v6e:2x2x1
jax: 0.10.0
libtpu: 0.0.40
codegen_flags: <defaults>
</compile_context>

<pallas_src>
import jax
import jax.numpy as jnp
from jax.experimental import pallas as pl
from jax.experimental.pallas import tpu as pltpu


def _round_up(x, m):
    return ((x + m - 1) // m) * m


def _gen_states_kernel(idx_ref, tbl_ref, out_ref):
    # idx_ref: (tile_n, 1)       int32 -- tile of flattened indices
    # tbl_ref: (dat_pad, del_num) f32  -- sigmoid(table), rows padded to 8
    # out_ref: (tile_n, del_num)  f32
    tile_n = idx_ref.shape[0]
    dat_pad = tbl_ref.shape[0]

    idx = idx_ref[...]                                               # (tile_n, 1)
    row_ids = jax.lax.broadcasted_iota(jnp.int32, (tile_n, dat_pad), 1)
    onehot = (idx == row_ids).astype(tbl_ref.dtype)                  # (tile_n, dat_pad)

    # Exact gather: 0/1 one-hot x f32 table reassembles rows exactly on the MXU.
    out_ref[...] = jnp.dot(
        onehot, tbl_ref[...], preferred_element_type=jnp.float32
    ).astype(out_ref.dtype)


def _choose_tile(n, requested):
    tile = _round_up(max(int(requested), 128), 128)
    # Keep >=2 grid steps when there is enough work (megacore / v7x 2-TC).
    if n > 256:
        tile = min(tile, _round_up(pl.cdiv(n, 2), 128))
    # Never larger than needed to cover all rows in one block.
    if tile >= n:
        tile = _round_up(n, 8)
    return max(tile, 8)


def generator_states_forward(idx, emb_table, *, tile_n=2048):
    """idx: (B, S) int; emb_table: (dat_num, del_num) f32.
    Returns (B, S, 1, del_num) f32 == sigmoid(embedding(idx)).unsqueeze(2)."""
    B, S = idx.shape
    dat_num, del_num = emb_table.shape
    N = B * S

    # Sigmoid hoisted onto the tiny table (exact: the one-hot gather commutes
    # with the elementwise sigmoid).  Pad table rows to a multiple of 8 only.
    dat_pad = _round_up(dat_num, 8)
    tbl = jax.nn.sigmoid(emb_table.astype(jnp.float32))
    if dat_pad != dat_num:
        tbl = jnp.pad(tbl, ((0, dat_pad - dat_num), (0, 0)))

    tile_n = _choose_tile(N, tile_n)
    grid = (pl.cdiv(N, tile_n),)

    idx_flat = idx.reshape(N, 1).astype(jnp.int32)

    # ---- explicit VMEM budget (tracks tile-dependent temporaries) ---------
    del_i = _round_up(del_num, 128)      # internal lane padding of f32 rows
    dat_i = _round_up(dat_pad, 128)      # internal lane padding of one-hot
    vmem_bytes = (
        2 * tile_n * del_i * 4           # double-buffered output blocks
        + 2 * tile_n * 128 * 4           # double-buffered (tile_n, 1) idx blocks
        + 2 * dat_pad * del_i * 4        # double-buffered resident table
        + 3 * tile_n * dat_i * 4         # one-hot / iota / compare temporaries
        + tile_n * del_i * 4             # matmul result before store
        + (1 << 20)                      # headroom
    )
    vmem_bytes = int(min(max(vmem_bytes, 4 << 20), 64 << 20))

    cost = pl.CostEstimate(
        flops=2 * N * dat_pad * del_num,
        transcendentals=0,
        bytes_accessed=N * 4 + dat_pad * del_num * 4 + N * del_num * 4,
    )

    out_flat = pl.pallas_call(
        _gen_states_kernel,
        out_shape=jax.ShapeDtypeStruct((N, del_num), jnp.float32),
        grid_spec=pltpu.PrefetchScalarGridSpec(
            num_scalar_prefetch=0,
            grid=grid,
            in_specs=[
                # per-tile slice of the flattened index column vector
                pl.BlockSpec((tile_n, 1), lambda i: (i, 0)),
                # full (row-padded) sigmoid table; constant block -> resident
                pl.BlockSpec((dat_pad, del_num), lambda i: (0, 0)),
            ],
            out_specs=pl.BlockSpec((tile_n, del_num), lambda i: (i, 0)),
        ),
        compiler_params=pltpu.CompilerParams(
            dimension_semantics=("parallel",),   # shard tiles across TCs
            vmem_limit_bytes=vmem_bytes,
        ),
        cost_estimate=cost,
    )(idx_flat, tbl)

    # (N, del_num) -> (B, S, 1, del_num)   (metadata reshape, no extra pass)
    return out_flat.reshape(B, S, 1, del_num)


if __name__ == "__main__":
    key = jax.random.PRNGKey(0)

    configs = [
        # (dat_num, del_num, B, S) -- small shapes consistent with the module
        (16, 128, 2, 8),      # aligned columns, single tile
        (10, 96, 3, 5),       # unaligned del_num / dat_num, ragged block
        (12, 64, 4, 160),     # multi-tile grid with a partial final block
    ]

    ok = True
    for (dat_num, del_num, B, S) in configs:
        key, k_emb, k_idx = jax.random.split(key, 3)
        # nn.Embedding default init: weight ~ N(0, 1)
        emb_table = jax.random.normal(k_emb, (dat_num, del_num), dtype=jnp.float32)
        idx = jax.random.randint(k_idx, (B, S), 0, dat_num, dtype=jnp.int32)

        out = jax.block_until_ready(generator_states_forward(idx, emb_table))

        # Pure-JAX reference for correctness.
        ref = jax.nn.sigmoid(jnp.take(emb_table, idx, axis=0))[:, :, None, :]
        if out.shape != (B, S, 1, del_num):
            ok = False
        if not jnp.allclose(out, ref, atol=1e-6, rtol=1e-6):
            ok = False

    assert ok
    print("KERNEL_OK")
</pallas_src>

<mosaic_0001>
module attributes {stable_mosaic.version = 11 : i64} {
  func.func @_gen_states_kernel(%arg0: i32, %arg1: memref<16x1xi32, #tpu.memory_space<vmem>>, %arg2: memref<16x128xf32, #tpu.memory_space<vmem>>, %arg3: memref<16x128xf32, #tpu.memory_space<vmem>>) attributes {dimension_semantics = [#tpu.dimension_semantics<parallel>], iteration_bounds = array<i64: 1>, scalar_prefetch = 0 : i64, scratch_operands = 0 : i64, tpu.core_type = #tpu.core_type<tc>, window_params = [{transform_indices = @transform_0, window_bounds = array<i64: 16, 1>}, {pipeline_mode = #tpu.pipeline_mode<synchronous>, transform_indices = @transform_1, window_bounds = array<i64: 16, 128>}, {transform_indices = @transform_2, window_bounds = array<i64: 16, 128>}]} {
    %c0 = arith.constant 0 : index
    %c0_0 = arith.constant 0 : index
    %0 = vector.load %arg1[%c0, %c0_0] : memref<16x1xi32, #tpu.memory_space<vmem>>, vector<16x1xi32>
    %1 = tpu.iota {dimensions = array<i32: 1>} : vector<16x16xi32>
    %2 = vector.broadcast %0 : vector<16x1xi32> to vector<16x16xi32>
    %3 = arith.cmpi eq, %2, %1 : vector<16x16xi32>
    %4 = arith.extui %3 : vector<16x16xi1> to vector<16x16xi32>
    %5 = arith.sitofp %4 : vector<16x16xi32> to vector<16x16xf32>
    %c0_1 = arith.constant 0 : index
    %c0_2 = arith.constant 0 : index
    %6 = vector.load %arg2[%c0_1, %c0_2] : memref<16x128xf32, #tpu.memory_space<vmem>>, vector<16x128xf32>
    %cst = arith.constant dense<0.000000e+00> : vector<16x128xf32>
    %7 = tpu.matmul %5, %6, %cst {dimension_numbers = #tpu.dot_dimension_numbers<[1], [0], [0], [1], [0, 0, 1, 1], [], []>} : vector<16x16xf32>, vector<16x128xf32>, vector<16x128xf32> -> vector<16x128xf32>
    %c0_3 = arith.constant 0 : index
    %c0_4 = arith.constant 0 : index
    %8 = vector.load %arg3[%c0_3, %c0_4] : memref<16x128xf32, #tpu.memory_space<vmem>>, vector<16x128xf32>
    tpu.vector_store %arg3[%c0_3, %c0_4], %7 {strides = array<i32>} : memref<16x128xf32, #tpu.memory_space<vmem>>, vector<16x128xf32>,
    return
  }
  func.func @transform_0(%arg0: i32) -> (i32, i32) {
    %c0_i32 = arith.constant 0 : i32
    %c0_i32_0 = arith.constant 0 : i32
    return %arg0, %c0_i32 : i32, i32
  }
  func.func @transform_1(%arg0: i32) -> (i32, i32) {
    %c0_i32 = arith.constant 0 : i32
    %c0_i32_0 = arith.constant 0 : i32
    %c0_i32_1 = arith.constant 0 : i32
    return %c0_i32, %c0_i32_0 : i32, i32
  }
  func.func @transform_2(%arg0: i32) -> (i32, i32) {
    %c0_i32 = arith.constant 0 : i32
    %c0_i32_0 = arith.constant 0 : i32
    return %arg0, %c0_i32 : i32, i32
  }
}

</mosaic_0001>

<llo_original>
// kernel: tpu_custom_call.1
$region0: #{tpu_custom_call.1}
  #allocation0 [shape = 'u32[]', space=smem, size = 0x4, offset = 0x4, fixed_abs, tag = 'smem constant byte address 0x4 - core index']
  #allocation1 [shape = 'u32[144,128]{1,0:T(1,128)}', space=vmem, size = 0x12000, scoped, tag = 'internal scratch']
  %s0 = inlined_call_operand.vmem [shape: s32[16,1], index: 0, kind: input, shape index: {}]
  %s1 = inlined_call_operand.vmem [shape: f32[16,128], index: 1, kind: input, shape index: {}]
  %s2 = inlined_call_operand.hbm [shape: f32[16,128], index: 2, kind: output, shape index: {}]
  %s3 = sld [smem:[#allocation0]]
  $region18: #{tpu_custom_call.1} parent=0
    _
  %s5 = ssub.s32 1, %s3
  %s6 = scalar_select 0, %s5, %s3
  $region1: #{tpu_custom_call.1} parent=0
    #allocation2 [shape = 'u8[8192]{0}', space=vmem, size = 0x2000, scoped, tag = 'output window, operand 0, single buffered']
    #allocation3 [shape = 's32[1]{0}', space=sflag, size = 0x4, scoped, tag = 'scoped memory for tpu_custom_call.1']
    %7 = vsyncpa [#allocation3], 0
    // Predicated region
    $region2: #{tpu_custom_call.1} parent=1 // pred_check
      _
    $region3: #{tpu_custom_call.1} parent=1 // pred_check_branch
      %9 = sbr.rel (0) target = $region5
    $region4: #{tpu_custom_call.1} parent=1 // pred_region
      _
    $region5: #{tpu_custom_call.1} parent=1 // pred_fallthru
      _
    // Predicated region
    $region6: #{tpu_custom_call.1} parent=1 // pred_check
      _
    $region7: #{tpu_custom_call.1} parent=1 // pred_check_branch
      %11 = sbr.rel (0) target = $region9
    $region8: #{tpu_custom_call.1} parent=1 // pred_region
      _
    $region9: #{tpu_custom_call.1} parent=1 // pred_fallthru
      _
    %v12 = vld [vmem:[%s0] sm:$0xff]
    %v13 = vld [vmem:[%s0 + $0x8] sm:$0xff]
    %v14 = vlaneseq
    %v15 = vand.u32 %v14, 127
    %16 = vset.pattern.permute.xlu0 0
    %17 = vperm.xlu0 %16, %v12
    %v18 = vpop.permute.xlu0 %17
    %19 = vset.pattern.permute.xlu0 0
    %20 = vperm.xlu0 %19, %v13
    %v21 = vpop.permute.xlu0 %20
    %vm22 = vcmp.eq.s32.totalorder %v18, %v15
    %vm23 = vcmp.eq.s32.totalorder %v21, %v15
    %v24 = vsel %vm22, 1, 0
    %v25 = vsel %vm23, 1, 0
    %v26 = vcvt.s32.f32 %v24
    %v27 = vcvt.s32.f32 %v25
    %v28 = vld [vmem:[%s1] sm:$0xff]
    %v29 = vld [vmem:[%s1 + $0x8] sm:$0xff]
    %vm30 = vcmask 130048
    %v32 = vsel %vm30, %v26, 0
    %v35 = vsel %vm30, %v27, 0
    %37 = vmatprep.subr.mxu0 0.0
    %38 = vmatpush1.msra.mxu0 0.0
    %39 = vmatprep.subr.mxu0 0.0
    %40 = vmatpush1.msra.mxu0 0.0
    %41 = vmatprep.subr.mxu0 0.0
    %42 = vmatpush1.msra.mxu0 0.0
    %43 = vmatprep.subr.mxu0 0.0
    %44 = vmatpush1.msra.mxu0 0.0
    %45 = vmatprep.subr.mxu0 0.0
    %46 = vmatpush1.msra.mxu0 0.0
    %47 = vmatprep.subr.mxu0 0.0
    %48 = vmatpush1.msra.mxu0 0.0
    %49 = vmatprep.subr.mxu0 0.0
    %50 = vmatpush1.msra.mxu0 0.0
    %51 = vmatprep.subr.mxu0 0.0
    %52 = vmatpush1.msra.mxu0 0.0
    %53 = vmatprep.subr.mxu0 0.0
    %54 = vmatpush1.msra.mxu0 0.0
    %55 = vmatprep.subr.mxu0 0.0
    %56 = vmatpush1.msra.mxu0 0.0
    %57 = vmatprep.subr.mxu0 0.0
    %58 = vmatpush1.msra.mxu0 0.0
    %59 = vmatprep.subr.mxu0 0.0
    %60 = vmatpush1.msra.mxu0 0.0
    %61 = vmatprep.subr.mxu0 0.0
    %62 = vmatpush1.msra.mxu0 0.0
    %63 = vmatprep.subr.mxu0 0.0
    %64 = vmatpush1.msra.mxu0 0.0
    %65 = vmatprep.subr.mxu0 0.0
    %66 = vmatpush1.msra.mxu0 %v29
    %67 = vmatprep.subr.mxu0 0.0
    %68 = vmatpush1.msra.mxu0 %v28
    %69 = vmatprep.subr.mxu0 0.0
    %70 = vmatpush2.msra.mxu0 0.0
    %71 = vmatprep.subr.mxu0 0.0
    %72 = vmatpush2.msra.mxu0 0.0
    %73 = vmatprep.subr.mxu0 0.0
    %74 = vmatpush2.msra.mxu0 0.0
    %75 = vmatprep.subr.mxu0 0.0
    %76 = vmatpush2.msra.mxu0 0.0
    %77 = vmatprep.subr.mxu0 0.0
    %78 = vmatpush2.msra.mxu0 0.0
    %79 = vmatprep.subr.mxu0 0.0
    %80 = vmatpush2.msra.mxu0 0.0
    %81 = vmatprep.subr.mxu0 0.0
    %82 = vmatpush2.msra.mxu0 0.0
    %83 = vmatprep.subr.mxu0 0.0
    %84 = vmatpush2.msra.mxu0 0.0
    %85 = vmatprep.subr.mxu0 0.0
    %86 = vmatpush2.msra.mxu0 0.0
    %87 = vmatprep.subr.mxu0 0.0
    %88 = vmatpush2.msra.mxu0 0.0
    %89 = vmatprep.subr.mxu0 0.0
    %90 = vmatpush2.msra.mxu0 0.0
    %91 = vmatprep.subr.mxu0 0.0
    %92 = vmatpush2.msra.mxu0 0.0
    %93 = vmatprep.subr.mxu0 0.0
    %94 = vmatpush2.msra.mxu0 0.0
    %95 = vmatprep.subr.mxu0 0.0
    %96 = vmatpush2.msra.mxu0 0.0
    %97 = vmatprep.subr.mxu0 0.0
    %98 = vmatpush2.msra.mxu0 0.0
    %99 = vmatprep.subr.mxu0 0.0
    %100 = vmatpush2.msra.mxu0 0.0
    %101 = vmatprep.mubr.f32.mxu0 0.0
    %102 = vmatmul.mubr.f32.gmra.mxu0 %v32
    %v103 = vpop.f32.mrf.mxu0
    %v104 = vadd.f32 0.0, %v103
    %v105 = vpop.f32.mrf.mxu0
    %106 = vmatprep.mubr.f32.mxu0 0.0
    %107 = vmatmul.mubr.f32.gmra.mxu0 %v35
    %v108 = vpop.f32.mrf.mxu0
    %v109 = vadd.f32 0.0, %v108
    %v110 = vpop.f32.mrf.mxu0
    %111 = vdwg.mxu0
    %112 = vst [vmem:[#allocation2] sm:$0xff] %v104
    %113 = vst [vmem:[#allocation2 + $0x8] sm:$0xff] %v109
    // Predicated region
    $region10: #{tpu_custom_call.1} parent=1 // pred_check
      _
    $region11: #{tpu_custom_call.1} parent=1 // pred_check_branch
      %115 = sbr.rel (0) target = $region13
    $region12: #{tpu_custom_call.1} parent=1 // pred_region
      %s117 = ssub.s32 256, 256
      %118 = vsyncadd [#allocation3], %s117
      %s119 = sshll.u32 [#allocation2], 4
      %s120 = int_to_ptr.vmem [resolvable:$true] %s119
      %125 = dma.vmem_to_hbm [thread:$0]  %s120, 256, %s2, [#allocation3], 128, 128, 8
    $region13: #{tpu_custom_call.1} parent=1 // pred_fallthru
      _
    // Predicated region
    $region14: #{tpu_custom_call.1} parent=1 // pred_check
      _
    $region15: #{tpu_custom_call.1} parent=1 // pred_check_branch
      %127 = sbr.rel (0) target = $region17
    $region16: #{tpu_custom_call.1} parent=1 // pred_region
      %128 = dma.done [#allocation3], 256
    $region17: #{tpu_custom_call.1} parent=1 // pred_fallthru
      _
    %129 = vsyncpa [#allocation3], 1

</llo_original>
